<compile_context>
chip_gen: v7x
topology: tpu7x:2x2x1
jax: 0.10.0
libtpu: 0.0.40
codegen_flags: <defaults>
</compile_context>

<pallas_src>
import functools

import jax
import jax.numpy as jnp
from jax.experimental import pallas as pl
from jax.experimental.pallas import tpu as pltpu

_BN_EPS = 1e-5


def _bn_relu_conv_kernel(x_ref, scale_ref, shift_ref, wp_ref, o_ref, *, ksize, width):
    """Fused folded-BN + ReLU + kxk 'same' conv for one batch element.

    Layout: channel-major, spatially flattened.
      x_ref    : (1, Cin, H*W)  f32   (lane dim = H*W, dense)
      scale/shift : (Cin, 1)    f32   (folded BN, lane-broadcast)
      wp_ref   : (Cout, KH*KW*Cin) bf16, column order (kh, kw, ci)
      o_ref    : (1, Cout, H*W) f32   (lane-dense store, no scratch accumulator)
    """
    KH, KW = ksize
    W = width
    _, Cin, HW = x_ref.shape
    ph, pw = KH // 2, KW // 2
    PAD = ph * W + pw

    # --- folded BatchNorm + ReLU: one FMA + one max per element (f32 VPU) ---
    x = x_ref[0]                                                  # (Cin, HW)
    y = jnp.maximum(x * scale_ref[...] + shift_ref[...], 0.0)

    # --- flat zero padding of the spatial axis ---
    # Handles the conv's zero padding at the H borders; positions that would wrap
    # across a row boundary are killed by the W-boundary mask below.
    zpad = jnp.zeros((Cin, PAD), jnp.float32)
    yp = jnp.concatenate([zpad, y, zpad], axis=1)                 # (Cin, HW + 2*PAD)

    # Per-lane w coordinate for the W-boundary masks.
    wpos = jax.lax.broadcasted_iota(jnp.int32, (1, HW), 1) % W

    # --- im2col: KH*KW lane-shifted copies stacked along the contraction axis ---
    taps = []
    for kh in range(KH):
        dh = kh - ph
        for kw in range(KW):
            dw = kw - pw
            s = dh * W + dw
            tap = yp[:, PAD + s:PAD + s + HW]                     # lane-offset slice
            if dw != 0:
                valid = (wpos + dw >= 0) & (wpos + dw < W)
                tap = jnp.where(valid, tap, 0.0)
            taps.append(tap)
    y_taps = jnp.concatenate(taps, axis=0)                        # (KH*KW*Cin, HW) f32

    # --- single MXU matmul (bf16 operands, f32 accumulation) ---
    # Result is already channel-major (Cout, HW): lane-dense store straight into the
    # NCHW-flattened output block — no transpose, no VMEM scratch accumulator.
    z = jnp.dot(wp_ref[...], y_taps.astype(jnp.bfloat16),
                preferred_element_type=jnp.float32)
    o_ref[0] = z.astype(o_ref.dtype)


@jax.jit
def composite_layer_forward(x_nchw, gamma, beta, weight_oihw):
    """Fused BN(train-mode) -> ReLU -> Conv2d(kxk, s=1, 'same', no bias). NCHW in/out."""
    N, Cin, H, W = x_nchw.shape
    Cout, Cin_w, KH, KW = weight_oihw.shape
    assert Cin_w == Cin
    if KH != KW or KH % 2 != 1:
        raise NotImplementedError("only odd square kernels with padding=k//2, stride=1")
    HW = H * W   # ideally a multiple of 128 for fully dense lanes (256 at demo shapes)

    xf = x_nchw.astype(jnp.float32)

    # --- BN batch statistics in plain XLA (fused with nothing else needed; removes the
    #     extra Pallas stats kernel + its per-step overhead).  Two-pass form avoids the
    #     E[x^2]-mean^2 cancellation issue. ---
    mean = jnp.mean(xf, axis=(0, 2, 3))                                   # (Cin,)
    var = jnp.mean(jnp.square(xf - mean.reshape(1, Cin, 1, 1)), axis=(0, 2, 3))
    scale = gamma.astype(jnp.float32) * jax.lax.rsqrt(var + _BN_EPS)
    shift = beta.astype(jnp.float32) - mean * scale

    # Contiguous NCHW reshape: free (no transpose, no HBM round-trip).
    x_flat = xf.reshape(N, Cin, HW)

    # Pack the conv weight for the single im2col matmul, pre-cast to bf16:
    #   wp[co, (kh*KW + kw)*Cin + ci] = weight[co, ci, kh, kw]
    wp = (weight_oihw.astype(jnp.bfloat16)
          .transpose(0, 2, 3, 1)
          .reshape(Cout, KH * KW * Cin))

    # Fused normalize + ReLU + conv, one image per grid step, pipelined over the batch.
    # Per-step VMEM: 2x(Cin*HW*4) in + 2x(Cout*HW*4) out + weight + ~(KH*KW*Cin*HW*4)
    # intermediates — tens of KiB at these shapes, far under every generation's limit.
    out_flat = pl.pallas_call(
        functools.partial(_bn_relu_conv_kernel, ksize=(KH, KW), width=W),
        out_shape=jax.ShapeDtypeStruct((N, Cout, HW), jnp.float32),
        grid=(N,),
        in_specs=[
            pl.BlockSpec((1, Cin, HW), lambda n: (n, 0, 0)),
            pl.BlockSpec((Cin, 1), lambda n: (0, 0)),
            pl.BlockSpec((Cin, 1), lambda n: (0, 0)),
            pl.BlockSpec((Cout, KH * KW * Cin), lambda n: (0, 0)),
        ],
        out_specs=pl.BlockSpec((1, Cout, HW), lambda n: (n, 0, 0)),
        compiler_params=pltpu.CompilerParams(
            dimension_semantics=("parallel",)),      # both TensorCores on v7x
    )(x_flat, scale.reshape(Cin, 1), shift.reshape(Cin, 1), wp)

    # Contiguous reshape back to NCHW: free.
    return out_flat.reshape(N, Cout, H, W)


def _reference_forward(x_nchw, gamma, beta, weight_oihw):
    """Pure-JAX reference mirroring PyTorch _CompositeLayer.forward (training-mode BN)."""
    mean = jnp.mean(x_nchw, axis=(0, 2, 3), keepdims=True)
    var = jnp.mean(jnp.square(x_nchw - mean), axis=(0, 2, 3), keepdims=True)
    y = (x_nchw - mean) * jax.lax.rsqrt(var + _BN_EPS)
    y = y * gamma.reshape(1, -1, 1, 1) + beta.reshape(1, -1, 1, 1)
    y = jnp.maximum(y, 0.0)
    KH, KW = weight_oihw.shape[2], weight_oihw.shape[3]
    return jax.lax.conv_general_dilated(
        y, weight_oihw, window_strides=(1, 1),
        padding=((KH // 2, KH // 2), (KW // 2, KW // 2)),
        dimension_numbers=("NCHW", "OIHW", "NCHW"))


if __name__ == "__main__":
    # Small shapes consistent with the module: _CompositeLayer(n_in=4, n_out=8)
    N, Cin, H, W = 2, 4, 16, 16
    Cout, KH, KW = 8, 3, 3

    key = jax.random.PRNGKey(0)
    kx, kg, kb, kconv = jax.random.split(key, 4)

    x = jax.random.normal(kx, (N, Cin, H, W), dtype=jnp.float32)
    gamma = 1.0 + 0.1 * jax.random.normal(kg, (Cin,), dtype=jnp.float32)              # bn.weight
    beta = 0.1 * jax.random.normal(kb, (Cin,), dtype=jnp.float32)                     # bn.bias
    conv_w = 0.1 * jax.random.normal(kconv, (Cout, Cin, KH, KW), dtype=jnp.float32)   # conv.weight

    out = jax.block_until_ready(composite_layer_forward(x, gamma, beta, conv_w))
    ref = jax.block_until_ready(_reference_forward(x, gamma, beta, conv_w))

    assert out.shape == (N, Cout, H, W), out.shape
    # Tolerance accounts for bf16 MXU operands (accumulation stays f32).
    assert jnp.allclose(out, ref, rtol=2e-2, atol=2e-2), float(jnp.max(jnp.abs(out - ref)))

    print("KERNEL_OK")
</pallas_src>

<mosaic_0001>
module attributes {stable_mosaic.version = 11 : i64} {
  func.func @_bn_relu_conv_kernel(%arg0: i32, %arg1: memref<1x4x256xf32, #tpu.memory_space<vmem>>, %arg2: memref<4x1xf32, #tpu.memory_space<vmem>>, %arg3: memref<4x1xf32, #tpu.memory_space<vmem>>, %arg4: memref<8x36xbf16, #tpu.memory_space<vmem>>, %arg5: memref<1x8x256xf32, #tpu.memory_space<vmem>>) attributes {dimension_semantics = [#tpu.dimension_semantics<parallel>], iteration_bounds = array<i64: 2>, scalar_prefetch = 0 : i64, scratch_operands = 0 : i64, tpu.core_type = #tpu.core_type<tc>, window_params = [{transform_indices = @transform_0, window_bounds = array<i64: 1, 4, 256>}, {pipeline_mode = #tpu.pipeline_mode<synchronous>, transform_indices = @transform_1, window_bounds = array<i64: 4, 1>}, {pipeline_mode = #tpu.pipeline_mode<synchronous>, transform_indices = @transform_2, window_bounds = array<i64: 4, 1>}, {pipeline_mode = #tpu.pipeline_mode<synchronous>, transform_indices = @transform_3, window_bounds = array<i64: 8, 36>}, {transform_indices = @transform_4, window_bounds = array<i64: 1, 8, 256>}]} {
    %c0 = arith.constant 0 : index
    %c0_0 = arith.constant 0 : index
    %c0_1 = arith.constant 0 : index
    %0 = vector.load %arg1[%c0, %c0_0, %c0_1] : memref<1x4x256xf32, #tpu.memory_space<vmem>>, vector<1x4x256xf32>
    %1 = vector.shape_cast %0 : vector<1x4x256xf32> to vector<4x256xf32>
    %c0_2 = arith.constant 0 : index
    %c0_3 = arith.constant 0 : index
    %2 = vector.load %arg2[%c0_2, %c0_3] : memref<4x1xf32, #tpu.memory_space<vmem>>, vector<4x1xf32>
    %3 = vector.broadcast %2 : vector<4x1xf32> to vector<4x256xf32>
    %4 = arith.mulf %1, %3 : vector<4x256xf32>
    %c0_4 = arith.constant 0 : index
    %c0_5 = arith.constant 0 : index
    %5 = vector.load %arg3[%c0_4, %c0_5] : memref<4x1xf32, #tpu.memory_space<vmem>>, vector<4x1xf32>
    %6 = vector.broadcast %5 : vector<4x1xf32> to vector<4x256xf32>
    %7 = arith.addf %4, %6 : vector<4x256xf32>
    %cst = arith.constant 0.000000e+00 : f32
    %8 = vector.broadcast %cst : f32 to vector<4x256xf32>
    %9 = arith.maximumf %7, %8 : vector<4x256xf32>
    %cst_6 = arith.constant 0.000000e+00 : f32
    %10 = vector.broadcast %cst_6 : f32 to vector<4x17xf32>
    %11 = tpu.concatenate %10, %9, %10 in 1 : vector<4x17xf32>, vector<4x256xf32>, vector<4x17xf32> -> vector<4x290xf32>
    %12 = tpu.iota {dimensions = array<i32: 1>} : vector<1x256xi32>
    %c16_i32 = arith.constant 16 : i32
    %c0_i32 = arith.constant 0 : i32
    %13 = arith.cmpi eq, %c16_i32, %c0_i32 : i32
    %c1_i32 = arith.constant 1 : i32
    %14 = arith.select %13, %c1_i32, %c16_i32 : i32
    %15 = vector.broadcast %14 : i32 to vector<1x256xi32>
    %16 = arith.remsi %12, %15 : vector<1x256xi32>
    %c0_i32_7 = arith.constant 0 : i32
    %17 = vector.broadcast %c0_i32_7 : i32 to vector<1x256xi32>
    %18 = arith.cmpi ne, %16, %17 : vector<1x256xi32>
    %c0_i32_8 = arith.constant 0 : i32
    %19 = vector.broadcast %c0_i32_8 : i32 to vector<1x256xi32>
    %20 = arith.cmpi slt, %16, %19 : vector<1x256xi32>
    %c0_i32_9 = arith.constant 0 : i32
    %21 = arith.cmpi slt, %14, %c0_i32_9 : i32
    %22 = vector.broadcast %21 : i1 to vector<1x256xi1>
    %23 = vector.broadcast %22 : vector<1x256xi1> to vector<1x256xi1>
    %24 = arith.xori %20, %23 : vector<1x256xi1>
    %25 = arith.andi %24, %18 : vector<1x256xi1>
    %26 = vector.broadcast %14 : i32 to vector<1x256xi32>
    %27 = arith.addi %16, %26 : vector<1x256xi32>
    %28 = arith.select %25, %27, %16 : vector<1x256xi1>, vector<1x256xi32>
    %29 = vector.extract_strided_slice %11 {offsets = [0, 0], sizes = [4, 256], strides = [1, 1]} : vector<4x290xf32> to vector<4x256xf32>
    %c-1_i32 = arith.constant -1 : i32
    %30 = vector.broadcast %c-1_i32 : i32 to vector<1x256xi32>
    %31 = arith.addi %28, %30 : vector<1x256xi32>
    %c0_i32_10 = arith.constant 0 : i32
    %32 = vector.broadcast %c0_i32_10 : i32 to vector<1x256xi32>
    %33 = arith.cmpi sge, %31, %32 : vector<1x256xi32>
    %c-1_i32_11 = arith.constant -1 : i32
    %34 = vector.broadcast %c-1_i32_11 : i32 to vector<1x256xi32>
    %35 = arith.addi %28, %34 : vector<1x256xi32>
    %c16_i32_12 = arith.constant 16 : i32
    %36 = vector.broadcast %c16_i32_12 : i32 to vector<1x256xi32>
    %37 = arith.cmpi slt, %35, %36 : vector<1x256xi32>
    %38 = arith.andi %33, %37 : vector<1x256xi1>
    %cst_13 = arith.constant 0.000000e+00 : f32
    %39 = vector.shape_cast %38 : vector<1x256xi1> to vector<1x256xi1>
    %40 = vector.broadcast %39 : vector<1x256xi1> to vector<4x256xi1>
    %41 = vector.broadcast %cst_13 : f32 to vector<4x256xf32>
    %42 = arith.select %40, %29, %41 : vector<4x256xi1>, vector<4x256xf32>
    %43 = vector.extract_strided_slice %11 {offsets = [0, 1], sizes = [4, 256], strides = [1, 1]} : vector<4x290xf32> to vector<4x256xf32>
    %44 = vector.extract_strided_slice %11 {offsets = [0, 2], sizes = [4, 256], strides = [1, 1]} : vector<4x290xf32> to vector<4x256xf32>
    %c1_i32_14 = arith.constant 1 : i32
    %45 = vector.broadcast %c1_i32_14 : i32 to vector<1x256xi32>
    %46 = arith.addi %28, %45 : vector<1x256xi32>
    %c0_i32_15 = arith.constant 0 : i32
    %47 = vector.broadcast %c0_i32_15 : i32 to vector<1x256xi32>
    %48 = arith.cmpi sge, %46, %47 : vector<1x256xi32>
    %c1_i32_16 = arith.constant 1 : i32
    %49 = vector.broadcast %c1_i32_16 : i32 to vector<1x256xi32>
    %50 = arith.addi %28, %49 : vector<1x256xi32>
    %c16_i32_17 = arith.constant 16 : i32
    %51 = vector.broadcast %c16_i32_17 : i32 to vector<1x256xi32>
    %52 = arith.cmpi slt, %50, %51 : vector<1x256xi32>
    %53 = arith.andi %48, %52 : vector<1x256xi1>
    %cst_18 = arith.constant 0.000000e+00 : f32
    %54 = vector.shape_cast %53 : vector<1x256xi1> to vector<1x256xi1>
    %55 = vector.broadcast %54 : vector<1x256xi1> to vector<4x256xi1>
    %56 = vector.broadcast %cst_18 : f32 to vector<4x256xf32>
    %57 = arith.select %55, %44, %56 : vector<4x256xi1>, vector<4x256xf32>
    %58 = vector.extract_strided_slice %11 {offsets = [0, 16], sizes = [4, 256], strides = [1, 1]} : vector<4x290xf32> to vector<4x256xf32>
    %c-1_i32_19 = arith.constant -1 : i32
    %59 = vector.broadcast %c-1_i32_19 : i32 to vector<1x256xi32>
    %60 = arith.addi %28, %59 : vector<1x256xi32>
    %c0_i32_20 = arith.constant 0 : i32
    %61 = vector.broadcast %c0_i32_20 : i32 to vector<1x256xi32>
    %62 = arith.cmpi sge, %60, %61 : vector<1x256xi32>
    %c-1_i32_21 = arith.constant -1 : i32
    %63 = vector.broadcast %c-1_i32_21 : i32 to vector<1x256xi32>
    %64 = arith.addi %28, %63 : vector<1x256xi32>
    %c16_i32_22 = arith.constant 16 : i32
    %65 = vector.broadcast %c16_i32_22 : i32 to vector<1x256xi32>
    %66 = arith.cmpi slt, %64, %65 : vector<1x256xi32>
    %67 = arith.andi %62, %66 : vector<1x256xi1>
    %cst_23 = arith.constant 0.000000e+00 : f32
    %68 = vector.shape_cast %67 : vector<1x256xi1> to vector<1x256xi1>
    %69 = vector.broadcast %68 : vector<1x256xi1> to vector<4x256xi1>
    %70 = vector.broadcast %cst_23 : f32 to vector<4x256xf32>
    %71 = arith.select %69, %58, %70 : vector<4x256xi1>, vector<4x256xf32>
    %72 = vector.extract_strided_slice %11 {offsets = [0, 17], sizes = [4, 256], strides = [1, 1]} : vector<4x290xf32> to vector<4x256xf32>
    %73 = vector.extract_strided_slice %11 {offsets = [0, 18], sizes = [4, 256], strides = [1, 1]} : vector<4x290xf32> to vector<4x256xf32>
    %c1_i32_24 = arith.constant 1 : i32
    %74 = vector.broadcast %c1_i32_24 : i32 to vector<1x256xi32>
    %75 = arith.addi %28, %74 : vector<1x256xi32>
    %c0_i32_25 = arith.constant 0 : i32
    %76 = vector.broadcast %c0_i32_25 : i32 to vector<1x256xi32>
    %77 = arith.cmpi sge, %75, %76 : vector<1x256xi32>
    %c1_i32_26 = arith.constant 1 : i32
    %78 = vector.broadcast %c1_i32_26 : i32 to vector<1x256xi32>
    %79 = arith.addi %28, %78 : vector<1x256xi32>
    %c16_i32_27 = arith.constant 16 : i32
    %80 = vector.broadcast %c16_i32_27 : i32 to vector<1x256xi32>
    %81 = arith.cmpi slt, %79, %80 : vector<1x256xi32>
    %82 = arith.andi %77, %81 : vector<1x256xi1>
    %cst_28 = arith.constant 0.000000e+00 : f32
    %83 = vector.shape_cast %82 : vector<1x256xi1> to vector<1x256xi1>
    %84 = vector.broadcast %83 : vector<1x256xi1> to vector<4x256xi1>
    %85 = vector.broadcast %cst_28 : f32 to vector<4x256xf32>
    %86 = arith.select %84, %73, %85 : vector<4x256xi1>, vector<4x256xf32>
    %87 = vector.extract_strided_slice %11 {offsets = [0, 32], sizes = [4, 256], strides = [1, 1]} : vector<4x290xf32> to vector<4x256xf32>
    %c-1_i32_29 = arith.constant -1 : i32
    %88 = vector.broadcast %c-1_i32_29 : i32 to vector<1x256xi32>
    %89 = arith.addi %28, %88 : vector<1x256xi32>
    %c0_i32_30 = arith.constant 0 : i32
    %90 = vector.broadcast %c0_i32_30 : i32 to vector<1x256xi32>
    %91 = arith.cmpi sge, %89, %90 : vector<1x256xi32>
    %c-1_i32_31 = arith.constant -1 : i32
    %92 = vector.broadcast %c-1_i32_31 : i32 to vector<1x256xi32>
    %93 = arith.addi %28, %92 : vector<1x256xi32>
    %c16_i32_32 = arith.constant 16 : i32
    %94 = vector.broadcast %c16_i32_32 : i32 to vector<1x256xi32>
    %95 = arith.cmpi slt, %93, %94 : vector<1x256xi32>
    %96 = arith.andi %91, %95 : vector<1x256xi1>
    %cst_33 = arith.constant 0.000000e+00 : f32
    %97 = vector.shape_cast %96 : vector<1x256xi1> to vector<1x256xi1>
    %98 = vector.broadcast %97 : vector<1x256xi1> to vector<4x256xi1>
    %99 = vector.broadcast %cst_33 : f32 to vector<4x256xf32>
    %100 = arith.select %98, %87, %99 : vector<4x256xi1>, vector<4x256xf32>
    %101 = vector.extract_strided_slice %11 {offsets = [0, 33], sizes = [4, 256], strides = [1, 1]} : vector<4x290xf32> to vector<4x256xf32>
    %102 = vector.extract_strided_slice %11 {offsets = [0, 34], sizes = [4, 256], strides = [1, 1]} : vector<4x290xf32> to vector<4x256xf32>
    %c1_i32_34 = arith.constant 1 : i32
    %103 = vector.broadcast %c1_i32_34 : i32 to vector<1x256xi32>
    %104 = arith.addi %28, %103 : vector<1x256xi32>
    %c0_i32_35 = arith.constant 0 : i32
    %105 = vector.broadcast %c0_i32_35 : i32 to vector<1x256xi32>
    %106 = arith.cmpi sge, %104, %105 : vector<1x256xi32>
    %c1_i32_36 = arith.constant 1 : i32
    %107 = vector.broadcast %c1_i32_36 : i32 to vector<1x256xi32>
    %108 = arith.addi %28, %107 : vector<1x256xi32>
    %c16_i32_37 = arith.constant 16 : i32
    %109 = vector.broadcast %c16_i32_37 : i32 to vector<1x256xi32>
    %110 = arith.cmpi slt, %108, %109 : vector<1x256xi32>
    %111 = arith.andi %106, %110 : vector<1x256xi1>
    %cst_38 = arith.constant 0.000000e+00 : f32
    %112 = vector.shape_cast %111 : vector<1x256xi1> to vector<1x256xi1>
    %113 = vector.broadcast %112 : vector<1x256xi1> to vector<4x256xi1>
    %114 = vector.broadcast %cst_38 : f32 to vector<4x256xf32>
    %115 = arith.select %113, %102, %114 : vector<4x256xi1>, vector<4x256xf32>
    %116 = tpu.concatenate %42, %43, %57, %71, %72, %86, %100, %101, %115 in 0 : vector<4x256xf32>, vector<4x256xf32>, vector<4x256xf32>, vector<4x256xf32>, vector<4x256xf32>, vector<4x256xf32>, vector<4x256xf32>, vector<4x256xf32>, vector<4x256xf32> -> vector<36x256xf32>
    %c0_39 = arith.constant 0 : index
    %c0_40 = arith.constant 0 : index
    %117 = vector.load %arg4[%c0_39, %c0_40] : memref<8x36xbf16, #tpu.memory_space<vmem>>, vector<8x36xbf16>
    %118 = arith.truncf %116 : vector<36x256xf32> to vector<36x256xbf16>
    %cst_41 = arith.constant dense<0.000000e+00> : vector<8x256xf32>
    %119 = tpu.matmul %117, %118, %cst_41 {dimension_numbers = #tpu.dot_dimension_numbers<[1], [0], [0], [1], [0, 0, 1, 1], [], []>} : vector<8x36xbf16>, vector<36x256xbf16>, vector<8x256xf32> -> vector<8x256xf32>
    %c0_42 = arith.constant 0 : index
    %c0_43 = arith.constant 0 : index
    %c0_44 = arith.constant 0 : index
    %120 = vector.load %arg5[%c0_42, %c0_43, %c0_44] : memref<1x8x256xf32, #tpu.memory_space<vmem>>, vector<1x8x256xf32>
    %121 = vector.shape_cast %120 : vector<1x8x256xf32> to vector<8x256xf32>
    %122 = vector.shape_cast %119 : vector<8x256xf32> to vector<1x8x256xf32>
    tpu.vector_store %arg5[%c0_42, %c0_43, %c0_44], %122 {strides = array<i32>} : memref<1x8x256xf32, #tpu.memory_space<vmem>>, vector<1x8x256xf32>,
    return
  }
  func.func @transform_0(%arg0: i32) -> (i32, i32, i32) {
    %c0_i32 = arith.constant 0 : i32
    %c0_i32_0 = arith.constant 0 : i32
    %c0_i32_1 = arith.constant 0 : i32
    return %arg0, %c0_i32, %c0_i32_0 : i32, i32, i32
  }
  func.func @transform_1(%arg0: i32) -> (i32, i32) {
    %c0_i32 = arith.constant 0 : i32
    %c0_i32_0 = arith.constant 0 : i32
    %c0_i32_1 = arith.constant 0 : i32
    return %c0_i32, %c0_i32_0 : i32, i32
  }
  func.func @transform_2(%arg0: i32) -> (i32, i32) {
    %c0_i32 = arith.constant 0 : i32
    %c0_i32_0 = arith.constant 0 : i32
    %c0_i32_1 = arith.constant 0 : i32
    return %c0_i32, %c0_i32_0 : i32, i32
  }
  func.func @transform_3(%arg0: i32) -> (i32, i32) {
    %c0_i32 = arith.constant 0 : i32
    %c0_i32_0 = arith.constant 0 : i32
    %c0_i32_1 = arith.constant 0 : i32
    return %c0_i32, %c0_i32_0 : i32, i32
  }
  func.func @transform_4(%arg0: i32) -> (i32, i32, i32) {
    %c0_i32 = arith.constant 0 : i32
    %c0_i32_0 = arith.constant 0 : i32
    %c0_i32_1 = arith.constant 0 : i32
    return %arg0, %c0_i32, %c0_i32_0 : i32, i32, i32
  }
}

</mosaic_0001>

<llo_original>
// kernel: composite_layer_forward.1
$region0: #{composite_layer_forward.1}
  #allocation0 [shape = 'u32[]', space=smem, size = 0x4, offset = 0x4, fixed_abs, tag = 'smem constant byte address 0x4 - core index']
  #allocation1 [shape = 'u32[144,128]{1,0:T(1,128)}', space=vmem, size = 0x12000, scoped, tag = 'internal scratch']
  %s0 = inlined_call_operand.vmem [shape: f32[2,4,256], index: 0, kind: input, shape index: {}]
  %s1 = inlined_call_operand.vmem [shape: f32[4,1], index: 1, kind: input, shape index: {}]
  %s2 = inlined_call_operand.vmem [shape: f32[4,1], index: 2, kind: input, shape index: {}]
  %s3 = inlined_call_operand.vmem [shape: bf16[8,36], index: 3, kind: input, shape index: {}]
  %s4 = inlined_call_operand.vmem [shape: f32[2,8,256], index: 4, kind: output, shape index: {}]
  %s5 = sld [smem:[#allocation0]]
  $region49: #{composite_layer_forward.1} parent=0
    _
  %s7 = ssub.s32 1, %s5
  %s8 = scalar_select 0, %s7, %s5
  loop: start=0, step=1, limit=4
  $region2: #{composite_layer_forward.1} parent=0 // loop_pre_header
    _
  $region3: #{composite_layer_forward.1} parent=0 // loop_header
    %s10 = sphi 0, %s14
    %p11 = scmp.ge.s32.totalorder %s10, 4
    %s20 = sphi 0, %s22
    %s23 = sphi 0, %s20
    %s24 = sphi 0, %s23
    %s40 = sphi 0, %s24
    %s44 = sphi 0, %s44
    %s46 = sphi 0, %s44
    %s47 = sphi 0, %s46
    %s61 = sphi 0, %s47
    %s65 = sphi 0, %s65
    %s67 = sphi 0, %s65
    %s68 = sphi 0, %s67
    %s82 = sphi 0, %s68
    %s86 = sphi 0, %s86
    %s88 = sphi 0, %s86
    %s89 = sphi 0, %s88
    %s103 = sphi 0, %s89
    %s109 = sphi 0, %s111
    %s112 = sphi 0, %s109
    %s113 = sphi 0, %s112
    %s129 = sphi 0, %s113
  $region4: #{composite_layer_forward.1} parent=0 // loop_header_branch
    %13 = sbr.rel (%p11) target = $region8
  $region5: #{composite_layer_forward.1} parent=0 // loop_body
    %s15 = ssub.s32 %s10, 1
    %s16 = ssub.s32 %s10, 2
    %s17 = sadd.s32 %s10, 1
    %s18 = ssub.s32 %s10, %s17
    %p19 = scmp.eq.s32.totalorder %s18, 0
    %s21 = sadd.s32 %s20, 1
    %s22 = scalar_select %p19, %s20, %s21
    %p25 = pneg %p19
    %p26 = scmp.eq.s32.totalorder %s10, 1
    %p27 = por %p25, %p26
    %p28 = scmp.ne.s32.totalorder %s20, %s23
    %p29 = scmp.eq.s32.totalorder %s10, 0
    %p30 = por %p28, %p29
    %p31 = scmp.ne.s32.totalorder %s20, %s23
    %p32 = scmp.eq.s32.totalorder %s15, 1
    %p33 = por %p31, %p32
    %p34 = scmp.ne.s32.totalorder %s23, %s24
    %p35 = scmp.eq.s32.totalorder %s15, 0
    %p36 = por %p34, %p35
    %p37 = scmp.ne.s32.totalorder %s23, %s24
    %p38 = scmp.eq.s32.totalorder %s16, 1
    %p39 = por %p37, %p38
    %p41 = scmp.ne.s32.totalorder %s24, %s40
    %p42 = scmp.eq.s32.totalorder %s16, 0
    %p43 = por %p41, %p42
    %s45 = sadd.s32 %s44, 1
    %p48 = scmp.eq.s32.totalorder %s10, 1
    %p49 = scmp.ne.s32.totalorder %s44, %s46
    %p50 = scmp.eq.s32.totalorder %s10, 0
    %p51 = por %p49, %p50
    %p52 = scmp.ne.s32.totalorder %s44, %s46
    %p53 = scmp.eq.s32.totalorder %s15, 1
    %p54 = por %p52, %p53
    %p55 = scmp.ne.s32.totalorder %s46, %s47
    %p56 = scmp.eq.s32.totalorder %s15, 0
    %p57 = por %p55, %p56
    %p58 = scmp.ne.s32.totalorder %s46, %s47
    %p59 = scmp.eq.s32.totalorder %s16, 1
    %p60 = por %p58, %p59
    %p62 = scmp.ne.s32.totalorder %s47, %s61
    %p63 = scmp.eq.s32.totalorder %s16, 0
    %p64 = por %p62, %p63
    %s66 = sadd.s32 %s65, 1
    %p69 = scmp.eq.s32.totalorder %s10, 1
    %p70 = scmp.ne.s32.totalorder %s65, %s67
    %p71 = scmp.eq.s32.totalorder %s10, 0
    %p72 = por %p70, %p71
    %p73 = scmp.ne.s32.totalorder %s65, %s67
    %p74 = scmp.eq.s32.totalorder %s15, 1
    %p75 = por %p73, %p74
    %p76 = scmp.ne.s32.totalorder %s67, %s68
    %p77 = scmp.eq.s32.totalorder %s15, 0
    %p78 = por %p76, %p77
    %p79 = scmp.ne.s32.totalorder %s67, %s68
    %p80 = scmp.eq.s32.totalorder %s16, 1
    %p81 = por %p79, %p80
    %p83 = scmp.ne.s32.totalorder %s68, %s82
    %p84 = scmp.eq.s32.totalorder %s16, 0
    %p85 = por %p83, %p84
    %s87 = sadd.s32 %s86, 1
    %p90 = scmp.eq.s32.totalorder %s10, 1
    %p91 = scmp.ne.s32.totalorder %s86, %s88
    %p92 = scmp.eq.s32.totalorder %s10, 0
    %p93 = por %p91, %p92
    %p94 = scmp.ne.s32.totalorder %s86, %s88
    %p95 = scmp.eq.s32.totalorder %s15, 1
    %p96 = por %p94, %p95
    %p97 = scmp.ne.s32.totalorder %s88, %s89
    %p98 = scmp.eq.s32.totalorder %s15, 0
    %p99 = por %p97, %p98
    %p100 = scmp.ne.s32.totalorder %s88, %s89
    %p101 = scmp.eq.s32.totalorder %s16, 1
    %p102 = por %p100, %p101
    %p104 = scmp.ne.s32.totalorder %s89, %s103
    %p105 = scmp.eq.s32.totalorder %s16, 0
    %p106 = por %p104, %p105
    %s107 = ssub.s32 %s10, %s17
    %p108 = scmp.eq.s32.totalorder %s107, 0
    %s110 = sadd.s32 %s109, 1
    %s111 = scalar_select %p108, %s109, %s110
    %p114 = pneg %p108
    %p115 = scmp.eq.s32.totalorder %s10, 1
    %p116 = por %p114, %p115
    %p117 = scmp.ne.s32.totalorder %s109, %s112
    %p118 = scmp.eq.s32.totalorder %s10, 0
    %p119 = por %p117, %p118
    %p120 = scmp.ne.s32.totalorder %s109, %s112
    %p121 = scmp.eq.s32.totalorder %s15, 1
    %p122 = por %p120, %p121
    %p123 = scmp.ne.s32.totalorder %s112, %s113
    %p124 = scmp.eq.s32.totalorder %s15, 0
    %p125 = por %p123, %p124
    %p126 = scmp.ne.s32.totalorder %s112, %s113
    %p127 = scmp.eq.s32.totalorder %s16, 1
    %p128 = por %p126, %p127
    %p130 = scmp.ne.s32.totalorder %s113, %s129
    %p131 = scmp.eq.s32.totalorder %s16, 0
    %p132 = por %p130, %p131
    %p133 = scmp.le.s32.totalorder 1, %s10
    %p134 = scmp.lt.s32.totalorder %s10, 3
    %p135 = pnand %p133, %p134
    %p136 = pneg %p135
    // Predicated region
    $region9: #{composite_layer_forward.1} parent=5 // pred_check
      _
    $region10: #{composite_layer_forward.1} parent=5 // pred_check_branch
      %138 = sbr.rel (%p135) target = $region12
    $region11: #{composite_layer_forward.1} parent=5 // pred_region
      %s139 = ssub.s32 %s10, 1
      // Predicated region
      $region13: #{composite_layer_forward.1} parent=11 // pred_check
        %p140 = pneg %p57
      $region14: #{composite_layer_forward.1} parent=11 // pred_check_branch
        %142 = sbr.rel (%p140) target = $region16
      $region15: #{composite_layer_forward.1} parent=11 // pred_region
        _
      $region16: #{composite_layer_forward.1} parent=11 // pred_fallthru
        _
      // Predicated region
      $region17: #{composite_layer_forward.1} parent=11 // pred_check
        %p143 = pneg %p78
      $region18: #{composite_layer_forward.1} parent=11 // pred_check_branch
        %145 = sbr.rel (%p143) target = $region20
      $region19: #{composite_layer_forward.1} parent=11 // pred_region
        _
      $region20: #{composite_layer_forward.1} parent=11 // pred_fallthru
        _
      // Predicated region
      $region21: #{composite_layer_forward.1} parent=11 // pred_check
        %p146 = pneg %p99
      $region22: #{composite_layer_forward.1} parent=11 // pred_check_branch
        %148 = sbr.rel (%p146) target = $region24
      $region23: #{composite_layer_forward.1} parent=11 // pred_region
        _
      $region24: #{composite_layer_forward.1} parent=11 // pred_fallthru
        _
    $region12: #{composite_layer_forward.1} parent=5 // pred_fallthru
      _
    %p149 = scmp.lt.s32.totalorder %s10, 2
    // Predicated region
    $region25: #{composite_layer_forward.1} parent=5 // pred_check
      %p150 = pneg %p149
    $region26: #{composite_layer_forward.1} parent=5 // pred_check_branch
      %152 = sbr.rel (%p150) target = $region28
    $region27: #{composite_layer_forward.1} parent=5 // pred_region
      // Predicated region
      $region29: #{composite_layer_forward.1} parent=27 // pred_check
        %p153 = pneg %p30
      $region30: #{composite_layer_forward.1} parent=27 // pred_check_branch
        %155 = sbr.rel (%p153) target = $region32
      $region31: #{composite_layer_forward.1} parent=27 // pred_region
        %p156 = scmp.lt.s32.totalorder %s10, 1
        %s157 = scalar_select %p156, %s10, 1
        %s158 = smul.addr %s157, 2
        %s159 = smul.addr %s158, 4
        %s160 = scalar_lea.vmem %s0, %s159
      $region32: #{composite_layer_forward.1} parent=27 // pred_fallthru
        _
    $region28: #{composite_layer_forward.1} parent=5 // pred_fallthru
      _
    %p161 = scmp.le.s32.totalorder 1, %s10
    %p162 = scmp.lt.s32.totalorder %s10, 3
    %p163 = pnand %p161, %p162
    %p164 = pneg %p163
    // Predicated region
    $region33: #{composite_layer_forward.1} parent=5 // pred_check
      _
    $region34: #{composite_layer_forward.1} parent=5 // pred_check_branch
      %166 = sbr.rel (%p163) target = $region36
    $region35: #{composite_layer_forward.1} parent=5 // pred_region
      %s167 = ssub.s32 %s10, 1
      %p168 = scmp.lt.s32.totalorder %s15, 1
      %s169 = scalar_select %p168, %s15, 1
      %s170 = smul.addr %s169, 2
      %s171 = smul.addr %s170, 4
      %s172 = scalar_lea.vmem %s0, %s171
      %p173 = pneg %p36
      %p174 = pneg %p33
      %p175 = pneg %p57
      %p176 = pneg %p54
      %p177 = pneg %p78
      %p178 = pneg %p75
      %p179 = pneg %p99
      %p180 = pneg %p96
      %p181 = pneg %p125
      %p182 = pneg %p122
      %p183 = scmp.lt.s32.totalorder %s15, 1
      %s184 = scalar_select %p183, %s15, 1
      %s185 = smul.addr %s184, 2
      %s186 = smul.addr %s185, 8
      %s187 = scalar_lea.vmem %s4, %s186
      %p188 = scmp.lt.s32.totalorder %s15, 1
      %s189 = scalar_select %p188, %s15, 1
      %s190 = smul.addr %s189, 2
      %s191 = smul.addr %s190, 4
      %s192 = scalar_lea.vmem %s0, %s191
      %p193 = scmp.lt.s32.totalorder %s15, 1
      %s194 = scalar_select %p193, %s15, 1
      %s195 = smul.addr %s194, 2
      %s196 = smul.addr %s195, 8
      %s197 = scalar_lea.vmem %s4, %s196
      %v199 = vld [vmem:[%s192] sm:$0xff]
      %v200 = vld [vmem:[%s1] sm:$0xf]
      %202 = vset.pattern.permute.xlu0 0
      %203 = vperm.xlu0 %202, %v200
      %v204 = vpop.permute.xlu0 %203
      %v206 = vunpack.c.l.s4 839922192
      %v207 = vunpack.c.0.s8 %v206
      %v208 = vlaneseq
      %v209 = vshrl.u32 %v208, 7
      %v210 = vsub.s32 %v207, %v209
      %v211 = vrot.slane %v204, %v210
      %v213 = vmul.f32 %v199, %v211
      %v214 = vld [vmem:[%s2] sm:$0xf]
      %216 = vset.pattern.permute.xlu0 0
      %217 = vperm.xlu0 %216, %v214
      %v218 = vpop.permute.xlu0 %217
      %v220 = vunpack.c.l.s4 839922192
      %v221 = vunpack.c.0.s8 %v220
      %v222 = vlaneseq
      %v223 = vshrl.u32 %v222, 7
      %v224 = vsub.s32 %v221, %v223
      %v225 = vrot.slane %v218, %v224
      %v227 = vadd.f32 %v213, %v225
      %v228 = vmax.f32 %v227, 0.0
      %v230 = vcombine.high %v228, %v228
      %231 = vrot.lane.b32.xlu0 %v228, 17
      %v232 = vpop.permute.xlu0 %231
      %233 = vrot.lane.b32.xlu0 %v230, 17
      %v234 = vpop.permute.xlu0 %233
      %vm235 = vcmask 138240
      %v236 = vsel %vm235, %v232, %v234
      %v240 = vsel %vm235, 0.0, %v232
      %v241 = vsel %vm235, %v234, 0.0
      %v242 = vlaneseq
      %v243 = vand.u32 %v242, 127
      %v244 = vadd.s32 %v243, 128
      %vm245 = vcmp.lt.s32.totalorder %v243, 0
      %v246 = vsub.s32 0, %v243
      %v247 = vsel %vm245, %v246, %v243
      %v248 = vshrl.u32 %v247, 4
      %v249 = vand.u32 %v247, 15
      %v250 = vsub.s32 0, %v249
      %v251 = vsel %vm245, %v250, %v249
      %vm252 = vcmp.lt.s32.totalorder %v244, 0
      %v253 = vsub.s32 0, %v244
      %v254 = vsel %vm252, %v253, %v244
      %v255 = vshrl.u32 %v254, 4
      %v256 = vand.u32 %v254, 15
      %v257 = vsub.s32 0, %v256
      %v258 = vsel %vm252, %v257, %v256
      %vm259 = vcmp.ne.s32.totalorder %v251, 0
      %vm260 = vcmp.ne.s32.totalorder %v258, 0
      %vm261 = vcmp.lt.s32.totalorder %v251, 0
      %vm262 = vcmp.lt.s32.totalorder %v258, 0
      %vm263 = vmand %vm261, %vm259
      %vm264 = vmand %vm262, %vm260
      %v265 = vadd.s32 %v251, 16
      %v266 = vadd.s32 %v258, 16
      %v267 = vsel %vm263, %v265, %v251
      %v268 = vsel %vm264, %v266, %v258
      %v269 = vadd.s32 %v267, 4294967295
      %v270 = vadd.s32 %v268, 4294967295
      %vm271 = vcmp.ge.s32.totalorder %v269, 0
      %vm272 = vcmp.ge.s32.totalorder %v270, 0
      %vm273 = vcmp.lt.s32.totalorder %v269, 16
      %vm274 = vcmp.lt.s32.totalorder %v270, 16
      %vm275 = vmand %vm271, %vm273
      %vm276 = vmand %vm272, %vm274
      %v277 = vsel %vm275, 1, 0
      %v278 = vsel %vm276, 1, 0
      %vm279 = vcmp.eq.s32.totalorder %v277, 1
      %vm280 = vcmp.eq.s32.totalorder %v278, 1
      %v281 = vsel %vm279, %v240, 0.0
      %v282 = vsel %vm280, %v236, 0.0
      %v283 = vadd.s32 %v267, 1
      %v284 = vadd.s32 %v268, 1
      %vm285 = vcmp.ge.s32.totalorder %v283, 0
      %vm286 = vcmp.ge.s32.totalorder %v284, 0
      %vm287 = vcmp.lt.s32.totalorder %v283, 16
      %vm288 = vcmp.lt.s32.totalorder %v284, 16
      %vm289 = vmand %vm285, %vm287
      %vm290 = vmand %vm286, %vm288
      %v291 = vsel %vm289, 1, 0
      %v292 = vsel %vm290, 1, 0
      %vm293 = vcmp.eq.s32.totalorder %v291, 1
      %vm294 = vcmp.eq.s32.totalorder %v292, 1
      %297 = vrot.lane.b32.xlu0 %v240, 126
      %v298 = vpop.permute.xlu0 %297
      %299 = vrot.lane.b32.xlu0 %v236, 126
      %v300 = vpop.permute.xlu0 %299
      %301 = vrot.lane.b32.xlu0 %v241, 126
      %v302 = vpop.permute.xlu0 %301
      %vm303 = vcmask 1031168
      %v304 = vsel %vm303, %v298, %v300
      %v305 = vsel %vm303, %v300, %v302
      %v308 = vsel %vm293, %v304, 0.0
      %v309 = vsel %vm294, %v305, 0.0
      %310 = vrot.lane.b32.xlu0 %v240, 112
      %v311 = vpop.permute.xlu0 %310
      %312 = vrot.lane.b32.xlu0 %v236, 112
      %v313 = vpop.permute.xlu0 %312
      %314 = vrot.lane.b32.xlu0 %v241, 112
      %v315 = vpop.permute.xlu0 %314
      %vm316 = vcmask 916480
      %v317 = vsel %vm316, %v311, %v313
      %v318 = vsel %vm316, %v313, %v315
      %v321 = vsel %vm279, %v317, 0.0
      %v322 = vsel %vm280, %v318, 0.0
      %323 = vrot.lane.b32.xlu0 %v240, 110
      %v324 = vpop.permute.xlu0 %323
      %325 = vrot.lane.b32.xlu0 %v236, 110
      %v326 = vpop.permute.xlu0 %325
      %327 = vrot.lane.b32.xlu0 %v241, 110
      %v328 = vpop.permute.xlu0 %327
      %vm329 = vcmask 900096
      %v330 = vsel %vm329, %v324, %v326
      %v331 = vsel %vm329, %v326, %v328
      %v334 = vsel %vm293, %v330, 0.0
      %v335 = vsel %vm294, %v331, 0.0
      %336 = vrot.lane.b32.xlu0 %v240, 96
      %v337 = vpop.permute.xlu0 %336
      %338 = vrot.lane.b32.xlu0 %v236, 96
      %v339 = vpop.permute.xlu0 %338
      %340 = vrot.lane.b32.xlu0 %v241, 96
      %v341 = vpop.permute.xlu0 %340
      %vm342 = vcmask 785408
      %v343 = vsel %vm342, %v337, %v339
      %v344 = vsel %vm342, %v339, %v341
      %v347 = vsel %vm279, %v343, 0.0
      %v348 = vsel %vm280, %v344, 0.0
      %349 = vrot.lane.b32.xlu0 %v240, 94
      %v350 = vpop.permute.xlu0 %349
      %351 = vrot.lane.b32.xlu0 %v236, 94
      %v352 = vpop.permute.xlu0 %351
      %353 = vrot.lane.b32.xlu0 %v241, 94
      %v354 = vpop.permute.xlu0 %353
      %vm355 = vcmask 769024
      %v356 = vsel %vm355, %v350, %v352
      %v357 = vsel %vm355, %v352, %v354
      %v360 = vsel %vm293, %v356, 0.0
      %v361 = vsel %vm294, %v357, 0.0
      %v362 = vrot.slane %v240, 4
      %v363 = vrot.slane %v236, 4
      %v364 = vrot.slane %v241, 4
      %365 = vrot.lane.b32.xlu0 %v362, 127
      %v366 = vpop.permute.xlu0 %365
      %367 = vrot.lane.b32.xlu0 %v363, 127
      %v368 = vpop.permute.xlu0 %367
      %369 = vrot.lane.b32.xlu0 %v364, 127
      %v370 = vpop.permute.xlu0 %369
      %vm371 = vcmask 1039360
      %v372 = vsel %vm371, %v366, %v368
      %v373 = vsel %vm371, %v368, %v370
      %v378 = vrot.slane %v321, 4
      %v379 = vrot.slane %v322, 4
      %382 = vrot.lane.b32.xlu0 %v240, 111
      %v383 = vpop.permute.xlu0 %382
      %384 = vrot.lane.b32.xlu0 %v236, 111
      %v385 = vpop.permute.xlu0 %384
      %386 = vrot.lane.b32.xlu0 %v241, 111
      %v387 = vpop.permute.xlu0 %386
      %vm388 = vcmask 908288
      %v389 = vsel %vm388, %v383, %v385
      %v390 = vsel %vm388, %v385, %v387
      %v395 = vrot.slane %v334, 4
      %v396 = vrot.slane %v335, 4
      %399 = vrot.lane.b32.xlu0 %v362, 95
      %v400 = vpop.permute.xlu0 %399
      %401 = vrot.lane.b32.xlu0 %v363, 95
      %v402 = vpop.permute.xlu0 %401
      %403 = vrot.lane.b32.xlu0 %v364, 95
      %v404 = vpop.permute.xlu0 %403
      %vm405 = vcmask 777216
      %v406 = vsel %vm405, %v400, %v402
      %v407 = vsel %vm405, %v402, %v404
      %vm410 = vcmask 1043456
      %v411 = vsel %vm410, %v281, %v372
      %v412 = vsel %vm410, %v282, %v373
      %v413 = vsel %vm410, %v308, %v378
      %v414 = vsel %vm410, %v309, %v379
      %v415 = vsel %vm410, %v389, %v395
      %v416 = vsel %vm410, %v390, %v396
      %v417 = vsel %vm410, %v347, %v406
      %v418 = vsel %vm410, %v348, %v407
      %v419 = vld [vmem:[%s3] sm:$0xf]
      %v420 = vpack.c.bf16 %v413, %v411
      %v421 = vpack.c.bf16 %v414, %v412
      %v422 = vpack.c.bf16 %v417, %v415
      %v423 = vpack.c.bf16 %v418, %v416
      %v424 = vpack.c.bf16 %v360, %v360
      %v425 = vpack.c.bf16 %v361, %v361
      %vm426 = vcmask 293888
      %v428 = vsel %vm426, %v419, 0
      %vm430 = vcmask 1041408
      %v432 = vsel %vm430, %v424, 0
      %v435 = vsel %vm430, %v425, 0
      %437 = vmatprep.subr.bf16.mxu0 %v421
      %438 = vmatpush1.bf16.msra.mxu0 %v420
      %439 = vmatprep.subr.bf16.mxu0 %v423
      %440 = vmatpush1.bf16.msra.mxu0 %v422
      %441 = vmatprep.subr.bf16.mxu0 %v435
      %442 = vmatpush1.bf16.msra.mxu0 %v432
      %443 = vmatprep.subr.bf16.mxu0 0
      %444 = vmatpush1.bf16.msra.mxu0 0
      %445 = vmatprep.subr.bf16.mxu0 0
      %446 = vmatpush1.bf16.msra.mxu0 0
      %447 = vmatprep.subr.bf16.mxu0 0
      %448 = vmatpush1.bf16.msra.mxu0 0
      %449 = vmatprep.subr.bf16.mxu0 0
      %450 = vmatpush1.bf16.msra.mxu0 0
      %451 = vmatprep.subr.bf16.mxu0 0
      %452 = vmatpush1.bf16.msra.mxu0 0
      %453 = vmatprep.subr.bf16.mxu0 0
      %454 = vmatpush1.bf16.msra.mxu0 0
      %455 = vmatprep.subr.bf16.mxu0 0
      %456 = vmatpush1.bf16.msra.mxu0 0
      %457 = vmatprep.subr.bf16.mxu0 0
      %458 = vmatpush1.bf16.msra.mxu0 0
      %459 = vmatprep.subr.bf16.mxu0 0
      %460 = vmatpush1.bf16.msra.mxu0 0
      %461 = vmatprep.subr.bf16.mxu0 0
      %462 = vmatpush1.bf16.msra.mxu0 0
      %463 = vmatprep.subr.bf16.mxu0 0
      %464 = vmatpush1.bf16.msra.mxu0 0
      %465 = vmatprep.subr.bf16.mxu0 0
      %466 = vmatpush1.bf16.msra.mxu0 0
      %467 = vmatprep.subr.bf16.mxu0 0
      %468 = vmatpush1.bf16.msra.mxu0 0
      %469 = vmatprep.mubr.bf16.mxu0 0
      %470 = vmatmul.mubr.bf16.gmra.mrb[0].mxu0 %v428
      %v471 = vpop.f32.mrb[0].mxu0
      %v472 = vadd.f32 0.0, %v471
      %v473 = vpop.f32.mrb[0].mxu0
      %v474 = vadd.f32 0.0, %v473
      %v475 = vpop.f32.mrb[0].mxu0
      %v476 = vpop.f32.mrb[0].mxu0
      %477 = vdwg.mxu0
      %478 = vst [vmem:[%s197] sm:$0xff] %v472
      %479 = vst [vmem:[%s197 + $0x8] sm:$0xff] %v474
      %p480 = scmp.lt.s32.totalorder %s15, 1
      %s481 = scalar_select %p480, %s15, 1
      %s482 = smul.addr %s481, 2
      %s483 = smul.addr %s482, 8
      %s484 = scalar_lea.vmem %s4, %s483
      // Predicated region
      $region37: #{composite_layer_forward.1} parent=35 // pred_check
        %p485 = pneg %p122
      $region38: #{composite_layer_forward.1} parent=35 // pred_check_branch
        %487 = sbr.rel (%p485) target = $region40
      $region39: #{composite_layer_forward.1} parent=35 // pred_region
        _
      $region40: #{composite_layer_forward.1} parent=35 // pred_fallthru
        _
    $region36: #{composite_layer_forward.1} parent=5 // pred_fallthru
      _
    %p488 = scmp.le.s32.totalorder 2, %s10
    // Predicated region
    $region41: #{composite_layer_forward.1} parent=5 // pred_check
      %p489 = pneg %p488
    $region42: #{composite_layer_forward.1} parent=5 // pred_check_branch
      %491 = sbr.rel (%p489) target = $region44
    $region43: #{composite_layer_forward.1} parent=5 // pred_region
      %s492 = ssub.s32 %s10, 2
      // Predicated region
      $region45: #{composite_layer_forward.1} parent=43 // pred_check
        %p493 = pneg %p128
      $region46: #{composite_layer_forward.1} parent=43 // pred_check_branch
        %495 = sbr.rel (%p493) target = $region48
      $region47: #{composite_layer_forward.1} parent=43 // pred_region
        %p496 = scmp.lt.s32.totalorder %s16, 1
        %s497 = scalar_select %p496, %s16, 1
        %s498 = smul.addr %s497, 2
        %s499 = smul.addr %s498, 8
        %s500 = scalar_lea.vmem %s4, %s499
      $region48: #{composite_layer_forward.1} parent=43 // pred_fallthru
        _
    $region44: #{composite_layer_forward.1} parent=5 // pred_fallthru
      _
  $region6: #{composite_layer_forward.1} parent=0 // loop_footer
    %s14 = sadd.s32 1, %s10
  $region7: #{composite_layer_forward.1} parent=0 // loop_footer_branch
    %9 = sbr.rel target = $region3
  $region8: #{composite_layer_forward.1} parent=0 // loop_exit
    _

</llo_original>
